<compile_context>
chip_gen: v7x
topology: tpu7x:2x2x1
jax: 0.10.0
libtpu: 0.0.40
codegen_flags: <defaults>
</compile_context>

<pallas_src>
import functools

import jax
import jax.numpy as jnp
import numpy as np
from jax import lax
from jax.experimental import pallas as pl
from jax.experimental.pallas import tpu as pltpu


def _round_up(x, m):
    return ((x + m - 1) // m) * m


def _cdiv(a, b):
    return -(-a // b)


def _sublane_multiple(dtype):
    # 8 rows for 4-byte dtypes, 16 for 2-byte, 32 for 1-byte (packed tiles).
    return max(8, 32 // jnp.dtype(dtype).itemsize)


def _ap_topk_kernel(preds_ref, labels_ref, ap_ref, *, top_k, chunk_rows):
    tb, n = preds_ref.shape
    n_chunks = tb // chunk_rows
    int_min = jnp.int32(jnp.iinfo(jnp.int32).min)

    @pl.loop(0, n_chunks)
    def _chunk(c):
        r0 = pl.multiple_of(c * chunk_rows, chunk_rows)

        # Load one row sub-chunk; its working set stays in vregs for the
        # whole top_k loop (for typical N), so VMEM sees it only once.
        p = preds_ref[pl.ds(r0, chunk_rows), :].astype(jnp.float32)   # (cr, N)
        rel = (labels_ref[pl.ds(r0, chunk_rows), :] != 0).astype(jnp.int32)

        # Signed-monotonic radix-float encoding of the score, relevance in LSB.
        bits = pltpu.bitcast(p, jnp.int32)
        okey = bits ^ ((bits >> 31) & jnp.int32(0x7FFFFFFF))
        key0 = (okey & jnp.int32(-2)) | rel                           # (cr, N) int32

        def body(j, carry):
            key, cumrel, ap_sum, num_rel = carry
            # One cross-lane reduce gives both the rank-(j+1) score and its
            # relevance bit.  Exhausted rows give int_min -> LSB 0 -> no-op.
            m = jnp.max(key, axis=-1, keepdims=True)                  # (cr, 1)
            rel_j = (m & 1).astype(jnp.float32)                       # (cr, 1)
            cumrel = cumrel + rel_j
            inv_rank = 1.0 / lax.convert_element_type(j + 1, jnp.float32)
            ap_sum = ap_sum + rel_j * cumrel * inv_rank
            num_rel = num_rel + rel_j
            key = jnp.where(key == m, int_min, key)                   # knock out rank j+1
            return key, cumrel, ap_sum, num_rel

        zeros = jnp.zeros((chunk_rows, 1), jnp.float32)
        unroll = True if top_k <= 8 else 4
        _, _, ap_sum, num_rel = lax.fori_loop(
            0, top_k, body, (key0, zeros, zeros, zeros), unroll=unroll)

        ap = jnp.where(num_rel > 0.0, ap_sum / jnp.maximum(num_rel, 1.0), 0.0)
        ap_ref[pl.ds(r0, chunk_rows), :] = ap


def retrieval_map_pallas(preds, labels, top_k, *,
                         vmem_budget_bytes=8 << 20, max_block_b=1024):
    """preds: [B, N] scores, labels: [B, N] binary relevance (any dtype; int8/bool
    recommended).  Returns (mean_ap scalar, per_query_ap [B])."""
    B, N = preds.shape
    p_bytes = jnp.dtype(preds.dtype).itemsize
    l_bytes = jnp.dtype(labels.dtype).itemsize

    # Dtype-aware sublane alignment (packed-tile minimum of the narrower input).
    align = max(_sublane_multiple(preds.dtype), _sublane_multiple(labels.dtype))
    chunk_rows = align

    # Batch-tile rows from the double-buffered-input VMEM budget.
    per_row = 2 * N * (p_bytes + l_bytes)                 # 2 pipeline buffers per input
    tb = max(align, (vmem_budget_bytes // max(per_row, 1) // align) * align)
    tb = min(tb, max_block_b)
    b_aligned = _round_up(B, align)
    tb = min(tb, b_aligned)
    if b_aligned >= 2 * align:                            # >=2 tiles -> both TCs get work (v7x)
        tb = min(tb, _round_up(_cdiv(b_aligned, 2), align))
    tb = max(tb, align)

    num_blocks = _cdiv(B, tb)
    bp = num_blocks * tb
    if bp != B:                                           # padded rows -> AP 0, sliced off
        preds = jnp.pad(preds, ((0, bp - B), (0, 0)))
        labels = jnp.pad(labels, ((0, bp - B), (0, 0)))

    est = 2 * tb * N * (p_bytes + l_bytes) + 8 * chunk_rows * N + (2 << 20)
    vmem_limit = int(min(max(est, 16 << 20), 64 << 20))

    aps = pl.pallas_call(
        functools.partial(_ap_topk_kernel, top_k=int(top_k), chunk_rows=chunk_rows),
        out_shape=jax.ShapeDtypeStruct((bp, 1), jnp.float32),
        grid_spec=pltpu.PrefetchScalarGridSpec(
            num_scalar_prefetch=0,
            grid=(num_blocks,),
            in_specs=[pl.BlockSpec((tb, N), lambda i: (i, 0)),
                      pl.BlockSpec((tb, N), lambda i: (i, 0))],
            out_specs=pl.BlockSpec((tb, 1), lambda i: (i, 0)),
        ),
        compiler_params=pltpu.CompilerParams(
            dimension_semantics=("parallel",),            # split B-tiles across TCs
            vmem_limit_bytes=vmem_limit),
    )(preds, labels)                                      # native dtypes; cast in-kernel
    aps = aps[:B, 0]
    return jnp.mean(aps), aps


class FixedRetrievalMAP:
    """JAX/Pallas port of the PyTorch module; mirrors forward/update/compute."""

    def __init__(self, top_k: int):
        self.top_k = int(top_k)
        self.rmap = []   # per-query AP arrays kept ON DEVICE until compute()
        self._fn = jax.jit(functools.partial(retrieval_map_pallas, top_k=self.top_k))

    def forward(self, preds, labels):
        mean_ap, aps = self._fn(jnp.asarray(preds), jnp.asarray(labels))
        self.rmap.append(aps)          # no host sync per step (perf review)
        return mean_ap                 # device scalar; float(mean_ap) to materialize

    __call__ = forward

    def update(self, preds, labels):
        self.forward(preds, labels)

    def compute(self):
        result = float(jnp.mean(jnp.concatenate(self.rmap))) if self.rmap else float("nan")
        self.rmap.clear()
        return result


def _reference_ap(p, l, top_k):
    """NumPy reference matching torchmetrics retrieval_average_precision."""
    order = np.argsort(-p, kind="stable")
    tgt = l[order][:top_k]
    if tgt.sum() == 0:
        return 0.0
    positions = np.arange(1, len(tgt) + 1, dtype=np.float64)[tgt > 0]
    return float(np.mean((np.arange(len(positions), dtype=np.float64) + 1.0) / positions))


if __name__ == "__main__":
    def _check(B, N, top_k, seed, labels_dtype=jnp.int8):
        kp, kl = jax.random.split(jax.random.PRNGKey(seed))
        preds = jax.random.normal(kp, (B, N), dtype=jnp.float32)
        labels = (jax.random.uniform(kl, (B, N)) < 0.15).astype(labels_dtype)
        mean_ap, aps = retrieval_map_pallas(preds, labels, top_k)
        mean_ap = float(jax.block_until_ready(mean_ap))
        p_np = np.asarray(preds)
        l_np = np.asarray(labels).astype(np.float64)
        ref = float(np.mean([_reference_ap(p_np[b], l_np[b], top_k) for b in range(B)]))
        assert np.allclose(mean_ap, ref, atol=1e-5), (B, N, top_k, mean_ap, ref)
        return preds, labels, ref

    # Small shapes consistent with the module: B queries x N candidate documents.
    preds, labels, ref = _check(B=8, N=128, top_k=5, seed=0)           # int8 labels path
    _check(B=6, N=256, top_k=10, seed=1, labels_dtype=jnp.float32)     # row padding + f32 labels
    _check(B=64, N=512, top_k=12, seed=2)                              # multi-block grid (megacore)

    metric = FixedRetrievalMAP(top_k=5)
    out = metric.forward(preds, labels)
    out = jax.block_until_ready(out)
    assert np.isclose(float(out), ref, atol=1e-5)
    assert np.isclose(metric.compute(), ref, atol=1e-5)

    print("KERNEL_OK")
</pallas_src>

<mosaic_0001>
module attributes {stable_mosaic.version = 11 : i64} {
  func.func @_ap_topk_kernel(%arg0: i32, %arg1: memref<32x128xf32, #tpu.memory_space<vmem>>, %arg2: memref<32x128xi8, #tpu.memory_space<vmem>>, %arg3: memref<32x1xf32, #tpu.memory_space<vmem>>) attributes {dimension_semantics = [#tpu.dimension_semantics<parallel>], iteration_bounds = array<i64: 1>, scalar_prefetch = 0 : i64, scratch_operands = 0 : i64, tpu.core_type = #tpu.core_type<tc>, window_params = [{transform_indices = @transform_0, window_bounds = array<i64: 32, 128>}, {transform_indices = @transform_1, window_bounds = array<i64: 32, 128>}, {transform_indices = @transform_2, window_bounds = array<i64: 32, 1>}]} {
    %c-2147483648_i32 = arith.constant -2147483648 : i32
    %c0_i32 = arith.constant 0 : i32
    %c1_i32 = arith.constant 1 : i32
    %0 = arith.muli %c0_i32, %c1_i32 : i32
    %c0_i32_0 = arith.constant 0 : i32
    %1 = arith.addi %c0_i32_0, %0 : i32
    %c32_i32 = arith.constant 32 : i32
    %2 = arith.muli %1, %c32_i32 : i32
    %3 = tpu.assume_multiple %2, 32 : i32
    %4 = arith.index_cast %3 : i32 to index
    %c0 = arith.constant 0 : index
    %5 = vector.load %arg1[%4, %c0] : memref<32x128xf32, #tpu.memory_space<vmem>>, vector<32x128xf32>
    %6 = arith.index_cast %3 : i32 to index
    %c0_1 = arith.constant 0 : index
    %7 = vector.load %arg2[%6, %c0_1] : memref<32x128xi8, #tpu.memory_space<vmem>>, vector<32x128xi8>
    %c0_i8 = arith.constant 0 : i8
    %8 = vector.broadcast %c0_i8 : i8 to vector<32x128xi8>
    %9 = arith.cmpi ne, %7, %8 : vector<32x128xi8>
    %10 = arith.extui %9 : vector<32x128xi1> to vector<32x128xi32>
    %11 = tpu.bitcast %5 : vector<32x128xf32> -> vector<32x128xi32>
    %c31_i32 = arith.constant 31 : i32
    %12 = vector.broadcast %c31_i32 : i32 to vector<32x128xi32>
    %13 = arith.shrsi %11, %12 : vector<32x128xi32>
    %c2147483647_i32 = arith.constant 2147483647 : i32
    %14 = vector.broadcast %c2147483647_i32 : i32 to vector<32x128xi32>
    %15 = arith.andi %13, %14 : vector<32x128xi32>
    %16 = arith.xori %11, %15 : vector<32x128xi32>
    %c-2_i32 = arith.constant -2 : i32
    %17 = vector.broadcast %c-2_i32 : i32 to vector<32x128xi32>
    %18 = arith.andi %16, %17 : vector<32x128xi32>
    %19 = arith.ori %18, %10 : vector<32x128xi32>
    %cst = arith.constant 0.000000e+00 : f32
    %20 = vector.broadcast %cst : f32 to vector<32x1xf32>
    %c0_i32_2 = arith.constant 0 : i32
    %cst_3 = arith.constant dense<-2147483648> : vector<32xi32>
    %21 = vector.multi_reduction <maxsi>, %19, %cst_3 [1] : vector<32x128xi32> to vector<32xi32>
    %22 = vector.shape_cast %21 : vector<32xi32> to vector<32x1xi32>
    %c1_i32_4 = arith.constant 1 : i32
    %23 = vector.broadcast %c1_i32_4 : i32 to vector<32x1xi32>
    %24 = arith.andi %22, %23 : vector<32x1xi32>
    %25 = arith.sitofp %24 : vector<32x1xi32> to vector<32x1xf32>
    %26 = arith.addf %20, %25 : vector<32x1xf32>
    %c1_i32_5 = arith.constant 1 : i32
    %27 = arith.addi %c0_i32_2, %c1_i32_5 : i32
    %28 = arith.sitofp %27 : i32 to f32
    %cst_6 = arith.constant 1.000000e+00 : f32
    %29 = arith.divf %cst_6, %28 : f32
    %30 = arith.mulf %25, %26 : vector<32x1xf32>
    %31 = vector.broadcast %29 : f32 to vector<32x1xf32>
    %32 = arith.mulf %30, %31 : vector<32x1xf32>
    %33 = arith.addf %20, %32 : vector<32x1xf32>
    %34 = arith.addf %20, %25 : vector<32x1xf32>
    %35 = vector.broadcast %22 : vector<32x1xi32> to vector<32x128xi32>
    %36 = arith.cmpi eq, %19, %35 : vector<32x128xi32>
    %37 = vector.broadcast %c-2147483648_i32 : i32 to vector<32x128xi32>
    %38 = arith.select %36, %37, %19 : vector<32x128xi1>, vector<32x128xi32>
    %c1_i32_7 = arith.constant 1 : i32
    %cst_8 = arith.constant dense<-2147483648> : vector<32xi32>
    %39 = vector.multi_reduction <maxsi>, %38, %cst_8 [1] : vector<32x128xi32> to vector<32xi32>
    %40 = vector.shape_cast %39 : vector<32xi32> to vector<32x1xi32>
    %c1_i32_9 = arith.constant 1 : i32
    %41 = vector.broadcast %c1_i32_9 : i32 to vector<32x1xi32>
    %42 = arith.andi %40, %41 : vector<32x1xi32>
    %43 = arith.sitofp %42 : vector<32x1xi32> to vector<32x1xf32>
    %44 = arith.addf %26, %43 : vector<32x1xf32>
    %c1_i32_10 = arith.constant 1 : i32
    %45 = arith.addi %c1_i32_7, %c1_i32_10 : i32
    %46 = arith.sitofp %45 : i32 to f32
    %cst_11 = arith.constant 1.000000e+00 : f32
    %47 = arith.divf %cst_11, %46 : f32
    %48 = arith.mulf %43, %44 : vector<32x1xf32>
    %49 = vector.broadcast %47 : f32 to vector<32x1xf32>
    %50 = arith.mulf %48, %49 : vector<32x1xf32>
    %51 = arith.addf %33, %50 : vector<32x1xf32>
    %52 = arith.addf %34, %43 : vector<32x1xf32>
    %53 = vector.broadcast %40 : vector<32x1xi32> to vector<32x128xi32>
    %54 = arith.cmpi eq, %38, %53 : vector<32x128xi32>
    %55 = vector.broadcast %c-2147483648_i32 : i32 to vector<32x128xi32>
    %56 = arith.select %54, %55, %38 : vector<32x128xi1>, vector<32x128xi32>
    %c2_i32 = arith.constant 2 : i32
    %cst_12 = arith.constant dense<-2147483648> : vector<32xi32>
    %57 = vector.multi_reduction <maxsi>, %56, %cst_12 [1] : vector<32x128xi32> to vector<32xi32>
    %58 = vector.shape_cast %57 : vector<32xi32> to vector<32x1xi32>
    %c1_i32_13 = arith.constant 1 : i32
    %59 = vector.broadcast %c1_i32_13 : i32 to vector<32x1xi32>
    %60 = arith.andi %58, %59 : vector<32x1xi32>
    %61 = arith.sitofp %60 : vector<32x1xi32> to vector<32x1xf32>
    %62 = arith.addf %44, %61 : vector<32x1xf32>
    %c1_i32_14 = arith.constant 1 : i32
    %63 = arith.addi %c2_i32, %c1_i32_14 : i32
    %64 = arith.sitofp %63 : i32 to f32
    %cst_15 = arith.constant 1.000000e+00 : f32
    %65 = arith.divf %cst_15, %64 : f32
    %66 = arith.mulf %61, %62 : vector<32x1xf32>
    %67 = vector.broadcast %65 : f32 to vector<32x1xf32>
    %68 = arith.mulf %66, %67 : vector<32x1xf32>
    %69 = arith.addf %51, %68 : vector<32x1xf32>
    %70 = arith.addf %52, %61 : vector<32x1xf32>
    %71 = vector.broadcast %58 : vector<32x1xi32> to vector<32x128xi32>
    %72 = arith.cmpi eq, %56, %71 : vector<32x128xi32>
    %73 = vector.broadcast %c-2147483648_i32 : i32 to vector<32x128xi32>
    %74 = arith.select %72, %73, %56 : vector<32x128xi1>, vector<32x128xi32>
    %c3_i32 = arith.constant 3 : i32
    %cst_16 = arith.constant dense<-2147483648> : vector<32xi32>
    %75 = vector.multi_reduction <maxsi>, %74, %cst_16 [1] : vector<32x128xi32> to vector<32xi32>
    %76 = vector.shape_cast %75 : vector<32xi32> to vector<32x1xi32>
    %c1_i32_17 = arith.constant 1 : i32
    %77 = vector.broadcast %c1_i32_17 : i32 to vector<32x1xi32>
    %78 = arith.andi %76, %77 : vector<32x1xi32>
    %79 = arith.sitofp %78 : vector<32x1xi32> to vector<32x1xf32>
    %80 = arith.addf %62, %79 : vector<32x1xf32>
    %c1_i32_18 = arith.constant 1 : i32
    %81 = arith.addi %c3_i32, %c1_i32_18 : i32
    %82 = arith.sitofp %81 : i32 to f32
    %cst_19 = arith.constant 1.000000e+00 : f32
    %83 = arith.divf %cst_19, %82 : f32
    %84 = arith.mulf %79, %80 : vector<32x1xf32>
    %85 = vector.broadcast %83 : f32 to vector<32x1xf32>
    %86 = arith.mulf %84, %85 : vector<32x1xf32>
    %87 = arith.addf %69, %86 : vector<32x1xf32>
    %88 = arith.addf %70, %79 : vector<32x1xf32>
    %89 = vector.broadcast %76 : vector<32x1xi32> to vector<32x128xi32>
    %90 = arith.cmpi eq, %74, %89 : vector<32x128xi32>
    %91 = vector.broadcast %c-2147483648_i32 : i32 to vector<32x128xi32>
    %92 = arith.select %90, %91, %74 : vector<32x128xi1>, vector<32x128xi32>
    %c4_i32 = arith.constant 4 : i32
    %cst_20 = arith.constant dense<-2147483648> : vector<32xi32>
    %93 = vector.multi_reduction <maxsi>, %92, %cst_20 [1] : vector<32x128xi32> to vector<32xi32>
    %94 = vector.shape_cast %93 : vector<32xi32> to vector<32x1xi32>
    %c1_i32_21 = arith.constant 1 : i32
    %95 = vector.broadcast %c1_i32_21 : i32 to vector<32x1xi32>
    %96 = arith.andi %94, %95 : vector<32x1xi32>
    %97 = arith.sitofp %96 : vector<32x1xi32> to vector<32x1xf32>
    %98 = arith.addf %80, %97 : vector<32x1xf32>
    %c1_i32_22 = arith.constant 1 : i32
    %99 = arith.addi %c4_i32, %c1_i32_22 : i32
    %100 = arith.sitofp %99 : i32 to f32
    %cst_23 = arith.constant 1.000000e+00 : f32
    %101 = arith.divf %cst_23, %100 : f32
    %102 = arith.mulf %97, %98 : vector<32x1xf32>
    %103 = vector.broadcast %101 : f32 to vector<32x1xf32>
    %104 = arith.mulf %102, %103 : vector<32x1xf32>
    %105 = arith.addf %87, %104 : vector<32x1xf32>
    %106 = arith.addf %88, %97 : vector<32x1xf32>
    %107 = vector.broadcast %94 : vector<32x1xi32> to vector<32x128xi32>
    %108 = arith.cmpi eq, %92, %107 : vector<32x128xi32>
    %109 = vector.broadcast %c-2147483648_i32 : i32 to vector<32x128xi32>
    %110 = arith.select %108, %109, %92 : vector<32x128xi1>, vector<32x128xi32>
    %c5_i32 = arith.constant 5 : i32
    %cst_24 = arith.constant 0.000000e+00 : f32
    %111 = vector.broadcast %cst_24 : f32 to vector<32x1xf32>
    %112 = arith.cmpf ogt, %106, %111 : vector<32x1xf32>
    %cst_25 = arith.constant 1.000000e+00 : f32
    %113 = vector.broadcast %cst_25 : f32 to vector<32x1xf32>
    %114 = arith.maximumf %106, %113 : vector<32x1xf32>
    %115 = arith.divf %105, %114 : vector<32x1xf32>
    %cst_26 = arith.constant 0.000000e+00 : f32
    %116 = vector.broadcast %cst_26 : f32 to vector<32x1xf32>
    %117 = arith.select %112, %115, %116 : vector<32x1xi1>, vector<32x1xf32>
    %118 = arith.index_cast %3 : i32 to index
    %c0_27 = arith.constant 0 : index
    %119 = vector.load %arg3[%118, %c0_27] : memref<32x1xf32, #tpu.memory_space<vmem>>, vector<32x1xf32>
    tpu.vector_store %arg3[%118, %c0_27], %117 {strides = array<i32>} : memref<32x1xf32, #tpu.memory_space<vmem>>, vector<32x1xf32>,
    %c1_i32_28 = arith.constant 1 : i32
    return
  }
  func.func @transform_0(%arg0: i32) -> (i32, i32) {
    %c0_i32 = arith.constant 0 : i32
    %c0_i32_0 = arith.constant 0 : i32
    return %arg0, %c0_i32 : i32, i32
  }
  func.func @transform_1(%arg0: i32) -> (i32, i32) {
    %c0_i32 = arith.constant 0 : i32
    %c0_i32_0 = arith.constant 0 : i32
    return %arg0, %c0_i32 : i32, i32
  }
  func.func @transform_2(%arg0: i32) -> (i32, i32) {
    %c0_i32 = arith.constant 0 : i32
    %c0_i32_0 = arith.constant 0 : i32
    return %arg0, %c0_i32 : i32, i32
  }
}

</mosaic_0001>

<llo_original>
// kernel: tpu_custom_call.1
$region0: #{tpu_custom_call.1}
  #allocation0 [shape = 'u32[]', space=smem, size = 0x4, offset = 0x4, fixed_abs, tag = 'smem constant byte address 0x4 - core index']
  #allocation1 [shape = 'u32[144,128]{1,0:T(1,128)}', space=vmem, size = 0x12000, scoped, tag = 'internal scratch']
  %s0 = inlined_call_operand.hbm [shape: f32[32,128], index: 0, kind: input, shape index: {}]
  %s1 = inlined_call_operand.hbm [shape: s8[32,128], index: 1, kind: input, shape index: {}]
  %s2 = inlined_call_operand.vmem [shape: f32[32,1], index: 2, kind: output, shape index: {}]
  %s3 = sld [smem:[#allocation0]]
  $region26: #{tpu_custom_call.1} parent=0
    _
  %s5 = ssub.s32 1, %s3
  %s6 = scalar_select 0, %s5, %s3
  $region1: #{tpu_custom_call.1} parent=0
    #allocation2 [shape = 'u8[16384]{0}', space=vmem, size = 0x4000, scoped, tag = 'input window, operand 0, single buffered']
    #allocation3 [shape = 's32[1]{0}', space=sflag, size = 0x4, scoped, tag = 'scoped memory for tpu_custom_call.1']
    #allocation4 [shape = 'u8[4096]{0}', space=vmem, size = 0x1000, scoped, tag = 'input window, operand 1, single buffered']
    #allocation5 [shape = 's32[1]{0}', space=sflag, size = 0x4, scoped, tag = 'scoped memory for tpu_custom_call.1']
    %7 = vsyncpa [#allocation3], 0
    %8 = vsyncpa [#allocation5], 0
    // Predicated region
    $region2: #{tpu_custom_call.1} parent=1 // pred_check
      _
    $region3: #{tpu_custom_call.1} parent=1 // pred_check_branch
      %10 = sbr.rel (0) target = $region5
    $region4: #{tpu_custom_call.1} parent=1 // pred_region
      %s12 = ssub.s32 512, 512
      %13 = vsyncadd [#allocation3], %s12
      %s14 = sshll.u32 [#allocation2], 4
      %s15 = int_to_ptr.vmem [resolvable:$true] %s14
      %20 = dma.hbm_to_vmem [thread:$0]  %s0, 512, %s15, [#allocation3], 128, 128, 8
    $region5: #{tpu_custom_call.1} parent=1 // pred_fallthru
      _
    // Predicated region
    $region6: #{tpu_custom_call.1} parent=1 // pred_check
      _
    $region7: #{tpu_custom_call.1} parent=1 // pred_check_branch
      %22 = sbr.rel (0) target = $region9
    $region8: #{tpu_custom_call.1} parent=1 // pred_region
      %s24 = ssub.s32 128, 128
      %25 = vsyncadd [#allocation5], %s24
      %s27 = sshll.u32 [#allocation4], 4
      %s28 = int_to_ptr.vmem [resolvable:$true] %s27
      %30 = dma.hbm_to_vmem [thread:$0]  %s1, 128, %s28, [#allocation5]
    $region9: #{tpu_custom_call.1} parent=1 // pred_fallthru
      _
    // Predicated region
    $region10: #{tpu_custom_call.1} parent=1 // pred_check
      _
    $region11: #{tpu_custom_call.1} parent=1 // pred_check_branch
      %32 = sbr.rel (0) target = $region13
    $region12: #{tpu_custom_call.1} parent=1 // pred_region
      %33 = dma.done [#allocation3], 512
    $region13: #{tpu_custom_call.1} parent=1 // pred_fallthru
      _
    // Predicated region
    $region14: #{tpu_custom_call.1} parent=1 // pred_check
      _
    $region15: #{tpu_custom_call.1} parent=1 // pred_check_branch
      %35 = sbr.rel (0) target = $region17
    $region16: #{tpu_custom_call.1} parent=1 // pred_region
      %36 = dma.done [#allocation5], 128
    $region17: #{tpu_custom_call.1} parent=1 // pred_fallthru
      _
    %v39 = vld [vmem:[#allocation2] sm:$0xff]
    %v40 = vld [vmem:[#allocation2 + $0x8] sm:$0xff]
    %v41 = vld [vmem:[#allocation2 + $0x10] sm:$0xff]
    %v42 = vld [vmem:[#allocation2 + $0x18] sm:$0xff]
    %v43 = vld [vmem:[#allocation4] sm:$0xff]
    %vm44 = vnez %v43
    %v45 = vsel %vm44, 16843009, 0
    %v46 = vunpack.c.0.s8 %v45
    %v47 = vunpack.c.1.s8 %v45
    %v48 = vunpack.c.2.s8 %v45
    %v49 = vunpack.c.3.s8 %v45
    %v50 = vpack.c.b16 %v46, %v46
    %v51 = vpack.c.b8 %v50, %v50
    %v52 = vpack.c.b16 %v47, %v47
    %v53 = vpack.c.b8 %v52, %v52
    %v54 = vpack.c.b16 %v48, %v48
    %v55 = vpack.c.b8 %v54, %v54
    %v56 = vpack.c.b16 %v49, %v49
    %v57 = vpack.c.b8 %v56, %v56
    %vm58 = vnez %v51
    %vm59 = vnez %v53
    %vm60 = vnez %v55
    %vm61 = vnez %v57
    %v62 = vsel %vm58, 16843009, 0
    %v63 = vsel %vm59, 16843009, 0
    %v64 = vsel %vm60, 16843009, 0
    %v65 = vsel %vm61, 16843009, 0
    %v66 = vunpack.c.0.s8 %v62
    %v67 = vunpack.c.0.s8 %v63
    %v68 = vunpack.c.0.s8 %v64
    %v69 = vunpack.c.0.s8 %v65
    %vm70 = vcmp.ne.s32.totalorder %v66, 0
    %vm71 = vcmp.ne.s32.totalorder %v67, 0
    %vm72 = vcmp.ne.s32.totalorder %v68, 0
    %vm73 = vcmp.ne.s32.totalorder %v69, 0
    %v74 = vsel %vm70, 1, 0
    %v75 = vsel %vm71, 1, 0
    %v76 = vsel %vm72, 1, 0
    %v77 = vsel %vm73, 1, 0
    %v82 = vshra.s32 %v39, 31
    %v83 = vshra.s32 %v40, 31
    %v84 = vshra.s32 %v41, 31
    %v85 = vshra.s32 %v42, 31
    %v86 = vand.u32 %v82, 2147483647
    %v87 = vand.u32 %v83, 2147483647
    %v88 = vand.u32 %v84, 2147483647
    %v89 = vand.u32 %v85, 2147483647
    %v90 = vxor.u32 %v39, %v86
    %v91 = vxor.u32 %v40, %v87
    %v92 = vxor.u32 %v41, %v88
    %v93 = vxor.u32 %v42, %v89
    %v94 = vand.u32 %v90, 4294967294
    %v95 = vand.u32 %v91, 4294967294
    %v96 = vand.u32 %v92, 4294967294
    %v97 = vand.u32 %v93, 4294967294
    %v98 = vor.u32 %v94, %v74
    %v99 = vor.u32 %v95, %v75
    %v100 = vor.u32 %v96, %v76
    %v101 = vor.u32 %v97, %v77
    %v102 = vand.u32 %v98, 65535
    %v103 = vshra.s32 %v98, 16
    %v104 = vcvt.s32.f32 %v102
    %v105 = vcvt.s32.f32 %v103
    %106 = vmax.xlane.f32.xlu0 %v105
    %v107 = vpop.xlane.xlu0 %106
    %vm108 = vcmp.eq.f32.partialorder %v105, %v107
    %v109 = vsel %vm108, %v104, -inf
    %110 = vmax.xlane.f32.xlu0 %v109
    %v111 = vpop.xlane.xlu0 %110
    %v112 = vcvt.f32.s32 %v111
    %v113 = vcvt.f32.s32 %v107
    %v114 = vshll.u32 %v113, 16
    %v115 = vadd.s32 %v114, %v112
    %v116 = vand.u32 %v99, 65535
    %v117 = vshra.s32 %v99, 16
    %v118 = vcvt.s32.f32 %v116
    %v119 = vcvt.s32.f32 %v117
    %120 = vmax.xlane.f32.xlu0 %v119
    %v121 = vpop.xlane.xlu0 %120
    %vm122 = vcmp.eq.f32.partialorder %v119, %v121
    %v123 = vsel %vm122, %v118, -inf
    %124 = vmax.xlane.f32.xlu0 %v123
    %v125 = vpop.xlane.xlu0 %124
    %v126 = vcvt.f32.s32 %v125
    %v127 = vcvt.f32.s32 %v121
    %v128 = vshll.u32 %v127, 16
    %v129 = vadd.s32 %v128, %v126
    %v130 = vand.u32 %v100, 65535
    %v131 = vshra.s32 %v100, 16
    %v132 = vcvt.s32.f32 %v130
    %v133 = vcvt.s32.f32 %v131
    %134 = vmax.xlane.f32.xlu0 %v133
    %v135 = vpop.xlane.xlu0 %134
    %vm136 = vcmp.eq.f32.partialorder %v133, %v135
    %v137 = vsel %vm136, %v132, -inf
    %138 = vmax.xlane.f32.xlu0 %v137
    %v139 = vpop.xlane.xlu0 %138
    %v140 = vcvt.f32.s32 %v139
    %v141 = vcvt.f32.s32 %v135
    %v142 = vshll.u32 %v141, 16
    %v143 = vadd.s32 %v142, %v140
    %v144 = vand.u32 %v101, 65535
    %v145 = vshra.s32 %v101, 16
    %v146 = vcvt.s32.f32 %v144
    %v147 = vcvt.s32.f32 %v145
    %148 = vmax.xlane.f32.xlu0 %v147
    %v149 = vpop.xlane.xlu0 %148
    %vm150 = vcmp.eq.f32.partialorder %v147, %v149
    %v151 = vsel %vm150, %v146, -inf
    %152 = vmax.xlane.f32.xlu0 %v151
    %v153 = vpop.xlane.xlu0 %152
    %v154 = vcvt.f32.s32 %v153
    %v155 = vcvt.f32.s32 %v149
    %v156 = vshll.u32 %v155, 16
    %v157 = vadd.s32 %v156, %v154
    %v158 = vand.u32 %v115, 1
    %v159 = vand.u32 %v129, 1
    %v160 = vand.u32 %v143, 1
    %v161 = vand.u32 %v157, 1
    %v162 = vcvt.s32.f32 %v158
    %v163 = vcvt.s32.f32 %v159
    %v164 = vcvt.s32.f32 %v160
    %v165 = vcvt.s32.f32 %v161
    %v166 = vadd.f32 %v162, 0.0
    %v167 = vadd.f32 %v163, 0.0
    %v168 = vadd.f32 %v164, 0.0
    %v169 = vadd.f32 %v165, 0.0
    %v170 = vmul.f32 %v162, %v166
    %v171 = vmul.f32 %v163, %v167
    %v172 = vmul.f32 %v164, %v168
    %v173 = vmul.f32 %v165, %v169
    %v174 = vadd.f32 %v170, 0.0
    %v175 = vadd.f32 %v171, 0.0
    %v176 = vadd.f32 %v172, 0.0
    %v177 = vadd.f32 %v173, 0.0
    %vm178 = vcmp.eq.s32.totalorder %v98, %v115
    %vm179 = vcmp.eq.s32.totalorder %v99, %v129
    %vm180 = vcmp.eq.s32.totalorder %v100, %v143
    %vm181 = vcmp.eq.s32.totalorder %v101, %v157
    %v182 = vsel %vm178, 2147483648, %v98
    %v183 = vsel %vm179, 2147483648, %v99
    %v184 = vsel %vm180, 2147483648, %v100
    %v185 = vsel %vm181, 2147483648, %v101
    %v186 = vand.u32 %v182, 65535
    %v187 = vshra.s32 %v182, 16
    %v188 = vcvt.s32.f32 %v186
    %v189 = vcvt.s32.f32 %v187
    %190 = vmax.xlane.f32.xlu0 %v189
    %v191 = vpop.xlane.xlu0 %190
    %vm192 = vcmp.eq.f32.partialorder %v189, %v191
    %v193 = vsel %vm192, %v188, -inf
    %194 = vmax.xlane.f32.xlu0 %v193
    %v195 = vpop.xlane.xlu0 %194
    %v196 = vcvt.f32.s32 %v195
    %v197 = vcvt.f32.s32 %v191
    %v198 = vshll.u32 %v197, 16
    %v199 = vadd.s32 %v198, %v196
    %v200 = vand.u32 %v183, 65535
    %v201 = vshra.s32 %v183, 16
    %v202 = vcvt.s32.f32 %v200
    %v203 = vcvt.s32.f32 %v201
    %204 = vmax.xlane.f32.xlu0 %v203
    %v205 = vpop.xlane.xlu0 %204
    %vm206 = vcmp.eq.f32.partialorder %v203, %v205
    %v207 = vsel %vm206, %v202, -inf
    %208 = vmax.xlane.f32.xlu0 %v207
    %v209 = vpop.xlane.xlu0 %208
    %v210 = vcvt.f32.s32 %v209
    %v211 = vcvt.f32.s32 %v205
    %v212 = vshll.u32 %v211, 16
    %v213 = vadd.s32 %v212, %v210
    %v214 = vand.u32 %v184, 65535
    %v215 = vshra.s32 %v184, 16
    %v216 = vcvt.s32.f32 %v214
    %v217 = vcvt.s32.f32 %v215
    %218 = vmax.xlane.f32.xlu0 %v217
    %v219 = vpop.xlane.xlu0 %218
    %vm220 = vcmp.eq.f32.partialorder %v217, %v219
    %v221 = vsel %vm220, %v216, -inf
    %222 = vmax.xlane.f32.xlu0 %v221
    %v223 = vpop.xlane.xlu0 %222
    %v224 = vcvt.f32.s32 %v223
    %v225 = vcvt.f32.s32 %v219
    %v226 = vshll.u32 %v225, 16
    %v227 = vadd.s32 %v226, %v224
    %v228 = vand.u32 %v185, 65535
    %v229 = vshra.s32 %v185, 16
    %v230 = vcvt.s32.f32 %v228
    %v231 = vcvt.s32.f32 %v229
    %232 = vmax.xlane.f32.xlu0 %v231
    %v233 = vpop.xlane.xlu0 %232
    %vm234 = vcmp.eq.f32.partialorder %v231, %v233
    %v235 = vsel %vm234, %v230, -inf
    %236 = vmax.xlane.f32.xlu0 %v235
    %v237 = vpop.xlane.xlu0 %236
    %v238 = vcvt.f32.s32 %v237
    %v239 = vcvt.f32.s32 %v233
    %v240 = vshll.u32 %v239, 16
    %v241 = vadd.s32 %v240, %v238
    %v242 = vand.u32 %v199, 1
    %v243 = vand.u32 %v213, 1
    %v244 = vand.u32 %v227, 1
    %v245 = vand.u32 %v241, 1
    %v246 = vcvt.s32.f32 %v242
    %v247 = vcvt.s32.f32 %v243
    %v248 = vcvt.s32.f32 %v244
    %v249 = vcvt.s32.f32 %v245
    %v250 = vadd.f32 %v166, %v246
    %v251 = vadd.f32 %v167, %v247
    %v252 = vadd.f32 %v168, %v248
    %v253 = vadd.f32 %v169, %v249
    %v254 = vmul.f32 %v246, %v250
    %v255 = vmul.f32 %v247, %v251
    %v256 = vmul.f32 %v248, %v252
    %v257 = vmul.f32 %v249, %v253
    %v258 = vmul.f32 %v254, 0.5
    %v259 = vmul.f32 %v255, 0.5
    %v260 = vmul.f32 %v256, 0.5
    %v261 = vmul.f32 %v257, 0.5
    %v262 = vadd.f32 %v174, %v258
    %v263 = vadd.f32 %v175, %v259
    %v264 = vadd.f32 %v176, %v260
    %v265 = vadd.f32 %v177, %v261
    %vm266 = vcmp.eq.s32.totalorder %v182, %v199
    %vm267 = vcmp.eq.s32.totalorder %v183, %v213
    %vm268 = vcmp.eq.s32.totalorder %v184, %v227
    %vm269 = vcmp.eq.s32.totalorder %v185, %v241
    %v270 = vsel %vm266, 2147483648, %v182
    %v271 = vsel %vm267, 2147483648, %v183
    %v272 = vsel %vm268, 2147483648, %v184
    %v273 = vsel %vm269, 2147483648, %v185
    %v274 = vand.u32 %v270, 65535
    %v275 = vshra.s32 %v270, 16
    %v276 = vcvt.s32.f32 %v274
    %v277 = vcvt.s32.f32 %v275
    %278 = vmax.xlane.f32.xlu0 %v277
    %v279 = vpop.xlane.xlu0 %278
    %vm280 = vcmp.eq.f32.partialorder %v277, %v279
    %v281 = vsel %vm280, %v276, -inf
    %282 = vmax.xlane.f32.xlu0 %v281
    %v283 = vpop.xlane.xlu0 %282
    %v284 = vcvt.f32.s32 %v283
    %v285 = vcvt.f32.s32 %v279
    %v286 = vshll.u32 %v285, 16
    %v287 = vadd.s32 %v286, %v284
    %v288 = vand.u32 %v271, 65535
    %v289 = vshra.s32 %v271, 16
    %v290 = vcvt.s32.f32 %v288
    %v291 = vcvt.s32.f32 %v289
    %292 = vmax.xlane.f32.xlu0 %v291
    %v293 = vpop.xlane.xlu0 %292
    %vm294 = vcmp.eq.f32.partialorder %v291, %v293
    %v295 = vsel %vm294, %v290, -inf
    %296 = vmax.xlane.f32.xlu0 %v295
    %v297 = vpop.xlane.xlu0 %296
    %v298 = vcvt.f32.s32 %v297
    %v299 = vcvt.f32.s32 %v293
    %v300 = vshll.u32 %v299, 16
    %v301 = vadd.s32 %v300, %v298
    %v302 = vand.u32 %v272, 65535
    %v303 = vshra.s32 %v272, 16
    %v304 = vcvt.s32.f32 %v302
    %v305 = vcvt.s32.f32 %v303
    %306 = vmax.xlane.f32.xlu0 %v305
    %v307 = vpop.xlane.xlu0 %306
    %vm308 = vcmp.eq.f32.partialorder %v305, %v307
    %v309 = vsel %vm308, %v304, -inf
    %310 = vmax.xlane.f32.xlu0 %v309
    %v311 = vpop.xlane.xlu0 %310
    %v312 = vcvt.f32.s32 %v311
    %v313 = vcvt.f32.s32 %v307
    %v314 = vshll.u32 %v313, 16
    %v315 = vadd.s32 %v314, %v312
    %v316 = vand.u32 %v273, 65535
    %v317 = vshra.s32 %v273, 16
    %v318 = vcvt.s32.f32 %v316
    %v319 = vcvt.s32.f32 %v317
    %320 = vmax.xlane.f32.xlu0 %v319
    %v321 = vpop.xlane.xlu0 %320
    %vm322 = vcmp.eq.f32.partialorder %v319, %v321
    %v323 = vsel %vm322, %v318, -inf
    %324 = vmax.xlane.f32.xlu0 %v323
    %v325 = vpop.xlane.xlu0 %324
    %v326 = vcvt.f32.s32 %v325
    %v327 = vcvt.f32.s32 %v321
    %v328 = vshll.u32 %v327, 16
    %v329 = vadd.s32 %v328, %v326
    %v330 = vand.u32 %v287, 1
    %v331 = vand.u32 %v301, 1
    %v332 = vand.u32 %v315, 1
    %v333 = vand.u32 %v329, 1
    %v334 = vcvt.s32.f32 %v330
    %v335 = vcvt.s32.f32 %v331
    %v336 = vcvt.s32.f32 %v332
    %v337 = vcvt.s32.f32 %v333
    %v338 = vadd.f32 %v250, %v334
    %v339 = vadd.f32 %v251, %v335
    %v340 = vadd.f32 %v252, %v336
    %v341 = vadd.f32 %v253, %v337
    %v342 = vmul.f32 %v334, %v338
    %v343 = vmul.f32 %v335, %v339
    %v344 = vmul.f32 %v336, %v340
    %v345 = vmul.f32 %v337, %v341
    %v346 = vmul.f32 %v342, 0.33333334
    %v347 = vmul.f32 %v343, 0.33333334
    %v348 = vmul.f32 %v344, 0.33333334
    %v349 = vmul.f32 %v345, 0.33333334
    %v350 = vadd.f32 %v262, %v346
    %v351 = vadd.f32 %v263, %v347
    %v352 = vadd.f32 %v264, %v348
    %v353 = vadd.f32 %v265, %v349
    %vm354 = vcmp.eq.s32.totalorder %v270, %v287
    %vm355 = vcmp.eq.s32.totalorder %v271, %v301
    %vm356 = vcmp.eq.s32.totalorder %v272, %v315
    %vm357 = vcmp.eq.s32.totalorder %v273, %v329
    %v358 = vsel %vm354, 2147483648, %v270
    %v359 = vsel %vm355, 2147483648, %v271
    %v360 = vsel %vm356, 2147483648, %v272
    %v361 = vsel %vm357, 2147483648, %v273
    %v362 = vand.u32 %v358, 65535
    %v363 = vshra.s32 %v358, 16
    %v364 = vcvt.s32.f32 %v362
    %v365 = vcvt.s32.f32 %v363
    %366 = vmax.xlane.f32.xlu0 %v365
    %v367 = vpop.xlane.xlu0 %366
    %vm368 = vcmp.eq.f32.partialorder %v365, %v367
    %v369 = vsel %vm368, %v364, -inf
    %370 = vmax.xlane.f32.xlu0 %v369
    %v371 = vpop.xlane.xlu0 %370
    %v372 = vcvt.f32.s32 %v371
    %v373 = vcvt.f32.s32 %v367
    %v374 = vshll.u32 %v373, 16
    %v375 = vadd.s32 %v374, %v372
    %v376 = vand.u32 %v359, 65535
    %v377 = vshra.s32 %v359, 16
    %v378 = vcvt.s32.f32 %v376
    %v379 = vcvt.s32.f32 %v377
    %380 = vmax.xlane.f32.xlu0 %v379
    %v381 = vpop.xlane.xlu0 %380
    %vm382 = vcmp.eq.f32.partialorder %v379, %v381
    %v383 = vsel %vm382, %v378, -inf
    %384 = vmax.xlane.f32.xlu0 %v383
    %v385 = vpop.xlane.xlu0 %384
    %v386 = vcvt.f32.s32 %v385
    %v387 = vcvt.f32.s32 %v381
    %v388 = vshll.u32 %v387, 16
    %v389 = vadd.s32 %v388, %v386
    %v390 = vand.u32 %v360, 65535
    %v391 = vshra.s32 %v360, 16
    %v392 = vcvt.s32.f32 %v390
    %v393 = vcvt.s32.f32 %v391
    %394 = vmax.xlane.f32.xlu0 %v393
    %v395 = vpop.xlane.xlu0 %394
    %vm396 = vcmp.eq.f32.partialorder %v393, %v395
    %v397 = vsel %vm396, %v392, -inf
    %398 = vmax.xlane.f32.xlu0 %v397
    %v399 = vpop.xlane.xlu0 %398
    %v400 = vcvt.f32.s32 %v399
    %v401 = vcvt.f32.s32 %v395
    %v402 = vshll.u32 %v401, 16
    %v403 = vadd.s32 %v402, %v400
    %v404 = vand.u32 %v361, 65535
    %v405 = vshra.s32 %v361, 16
    %v406 = vcvt.s32.f32 %v404
    %v407 = vcvt.s32.f32 %v405
    %408 = vmax.xlane.f32.xlu0 %v407
    %v409 = vpop.xlane.xlu0 %408
    %vm410 = vcmp.eq.f32.partialorder %v407, %v409
    %v411 = vsel %vm410, %v406, -inf
    %412 = vmax.xlane.f32.xlu0 %v411
    %v413 = vpop.xlane.xlu0 %412
    %v414 = vcvt.f32.s32 %v413
    %v415 = vcvt.f32.s32 %v409
    %v416 = vshll.u32 %v415, 16
    %v417 = vadd.s32 %v416, %v414
    %v418 = vand.u32 %v375, 1
    %v419 = vand.u32 %v389, 1
    %v420 = vand.u32 %v403, 1
    %v421 = vand.u32 %v417, 1
    %v422 = vcvt.s32.f32 %v418
    %v423 = vcvt.s32.f32 %v419
    %v424 = vcvt.s32.f32 %v420
    %v425 = vcvt.s32.f32 %v421
    %v426 = vadd.f32 %v338, %v422
    %v427 = vadd.f32 %v339, %v423
    %v428 = vadd.f32 %v340, %v424
    %v429 = vadd.f32 %v341, %v425
    %v430 = vmul.f32 %v422, %v426
    %v431 = vmul.f32 %v423, %v427
    %v432 = vmul.f32 %v424, %v428
    %v433 = vmul.f32 %v425, %v429
    %v434 = vmul.f32 %v430, 0.25
    %v435 = vmul.f32 %v431, 0.25
    %v436 = vmul.f32 %v432, 0.25
    %v437 = vmul.f32 %v433, 0.25
    %v438 = vadd.f32 %v350, %v434
    %v439 = vadd.f32 %v351, %v435
    %v440 = vadd.f32 %v352, %v436
    %v441 = vadd.f32 %v353, %v437
    %vm442 = vcmp.eq.s32.totalorder %v358, %v375
    %vm443 = vcmp.eq.s32.totalorder %v359, %v389
    %vm444 = vcmp.eq.s32.totalorder %v360, %v403
    %vm445 = vcmp.eq.s32.totalorder %v361, %v417
    %v446 = vsel %vm442, 2147483648, %v358
    %v447 = vsel %vm443, 2147483648, %v359
    %v448 = vsel %vm444, 2147483648, %v360
    %v449 = vsel %vm445, 2147483648, %v361
    %v450 = vand.u32 %v446, 65535
    %v451 = vshra.s32 %v446, 16
    %v452 = vcvt.s32.f32 %v450
    %v453 = vcvt.s32.f32 %v451
    %454 = vmax.xlane.f32.xlu0 %v453
    %v455 = vpop.xlane.xlu0 %454
    %vm456 = vcmp.eq.f32.partialorder %v453, %v455
    %v457 = vsel %vm456, %v452, -inf
    %458 = vmax.xlane.f32.xlu0 %v457
    %v459 = vpop.xlane.xlu0 %458
    %v460 = vcvt.f32.s32 %v459
    %v461 = vcvt.f32.s32 %v455
    %v462 = vshll.u32 %v461, 16
    %v463 = vadd.s32 %v462, %v460
    %v464 = vand.u32 %v447, 65535
    %v465 = vshra.s32 %v447, 16
    %v466 = vcvt.s32.f32 %v464
    %v467 = vcvt.s32.f32 %v465
    %468 = vmax.xlane.f32.xlu0 %v467
    %v469 = vpop.xlane.xlu0 %468
    %vm470 = vcmp.eq.f32.partialorder %v467, %v469
    %v471 = vsel %vm470, %v466, -inf
    %472 = vmax.xlane.f32.xlu0 %v471
    %v473 = vpop.xlane.xlu0 %472
    %v474 = vcvt.f32.s32 %v473
    %v475 = vcvt.f32.s32 %v469
    %v476 = vshll.u32 %v475, 16
    %v477 = vadd.s32 %v476, %v474
    %v478 = vand.u32 %v448, 65535
    %v479 = vshra.s32 %v448, 16
    %v480 = vcvt.s32.f32 %v478
    %v481 = vcvt.s32.f32 %v479
    %482 = vmax.xlane.f32.xlu0 %v481
    %v483 = vpop.xlane.xlu0 %482
    %vm484 = vcmp.eq.f32.partialorder %v481, %v483
    %v485 = vsel %vm484, %v480, -inf
    %486 = vmax.xlane.f32.xlu0 %v485
    %v487 = vpop.xlane.xlu0 %486
    %v488 = vcvt.f32.s32 %v487
    %v489 = vcvt.f32.s32 %v483
    %v490 = vshll.u32 %v489, 16
    %v491 = vadd.s32 %v490, %v488
    %v492 = vand.u32 %v449, 65535
    %v493 = vshra.s32 %v449, 16
    %v494 = vcvt.s32.f32 %v492
    %v495 = vcvt.s32.f32 %v493
    %496 = vmax.xlane.f32.xlu0 %v495
    %v497 = vpop.xlane.xlu0 %496
    %vm498 = vcmp.eq.f32.partialorder %v495, %v497
    %v499 = vsel %vm498, %v494, -inf
    %500 = vmax.xlane.f32.xlu0 %v499
    %v501 = vpop.xlane.xlu0 %500
    %v502 = vcvt.f32.s32 %v501
    %v503 = vcvt.f32.s32 %v497
    %v504 = vshll.u32 %v503, 16
    %v505 = vadd.s32 %v504, %v502
    %v506 = vand.u32 %v463, 1
    %v507 = vand.u32 %v477, 1
    %v508 = vand.u32 %v491, 1
    %v509 = vand.u32 %v505, 1
    %v510 = vcvt.s32.f32 %v506
    %v511 = vcvt.s32.f32 %v507
    %v512 = vcvt.s32.f32 %v508
    %v513 = vcvt.s32.f32 %v509
    %v514 = vadd.f32 %v426, %v510
    %v515 = vadd.f32 %v427, %v511
    %v516 = vadd.f32 %v428, %v512
    %v517 = vadd.f32 %v429, %v513
    %v518 = vmul.f32 %v510, %v514
    %v519 = vmul.f32 %v511, %v515
    %v520 = vmul.f32 %v512, %v516
    %v521 = vmul.f32 %v513, %v517
    %v522 = vmul.f32 %v518, 0.2
    %v523 = vmul.f32 %v519, 0.2
    %v524 = vmul.f32 %v520, 0.2
    %v525 = vmul.f32 %v521, 0.2
    %v526 = vadd.f32 %v438, %v522
    %v527 = vadd.f32 %v439, %v523
    %v528 = vadd.f32 %v440, %v524
    %v529 = vadd.f32 %v441, %v525
    %vm530 = vcmp.gt.f32.partialorder %v514, 0.0
    %vm531 = vcmp.gt.f32.partialorder %v515, 0.0
    %vm532 = vcmp.gt.f32.partialorder %v516, 0.0
    %vm533 = vcmp.gt.f32.partialorder %v517, 0.0
    %v534 = vmax.f32 %v514, 1.0
    %v535 = vmax.f32 %v515, 1.0
    %v536 = vmax.f32 %v516, 1.0
    %v537 = vmax.f32 %v517, 1.0
    %v538 = vrcp.pop %v534
    %v539 = vmul.f32 %v526, %v538
    %v540 = vrcp.pop %v535
    %v541 = vmul.f32 %v527, %v540
    %v542 = vrcp.pop %v536
    %v543 = vmul.f32 %v528, %v542
    %v544 = vrcp.pop %v537
    %v545 = vmul.f32 %v529, %v544
    %v546 = vsel %vm530, %v539, 0.0
    %v547 = vsel %vm531, %v541, 0.0
    %v548 = vsel %vm532, %v543, 0.0
    %v549 = vsel %vm533, %v545, 0.0
    %vm550 = vcmask 7168
    %551 = vst.msk [vmem:[%s2] sm:$0xff] %vm550, %v546
    %552 = vst.msk [vmem:[%s2 + $0x8] sm:$0xff] %vm550, %v547
    %553 = vst.msk [vmem:[%s2 + $0x10] sm:$0xff] %vm550, %v548
    %554 = vst.msk [vmem:[%s2 + $0x18] sm:$0xff] %vm550, %v549
    // Predicated region
    $region18: #{tpu_custom_call.1} parent=1 // pred_check
      _
    $region19: #{tpu_custom_call.1} parent=1 // pred_check_branch
      %556 = sbr.rel (0) target = $region21
    $region20: #{tpu_custom_call.1} parent=1 // pred_region
      _
    $region21: #{tpu_custom_call.1} parent=1 // pred_fallthru
      _
    // Predicated region
    $region22: #{tpu_custom_call.1} parent=1 // pred_check
      _
    $region23: #{tpu_custom_call.1} parent=1 // pred_check_branch
      %558 = sbr.rel (0) target = $region25
    $region24: #{tpu_custom_call.1} parent=1 // pred_region
      _
    $region25: #{tpu_custom_call.1} parent=1 // pred_fallthru
      _
    %559 = vsyncpa [#allocation3], 1
    %560 = vsyncpa [#allocation5], 1

</llo_original>
